<compile_context>
chip_gen: v7x
topology: tpu7x:2x2x1
jax: 0.10.0
libtpu: 0.0.40
codegen_flags: <defaults>
</compile_context>

<pallas_src>
import functools

import jax
import jax.numpy as jnp
import numpy as np
from jax.experimental import pallas as pl
from jax.experimental.pallas import tpu as pltpu


def _round_down(x, m):
    return (x // m) * m


def _vmem_capacity_bytes():
    """Physical per-core VMEM, with a v7x-safe fallback."""
    try:
        info = pltpu.get_tpu_info()
        cap = getattr(info, "vmem_capacity_bytes", None)
        if cap:
            return int(cap)
    except Exception:
        pass
    return 64 << 20          # v7x per-TensorCore size == most conservative


def _cbm_kernel(n_total,
                labels_ref, ypT_ref, cpT_ref, ctT_ref,
                class_out_ref, concept_out_ref,
                acc_cls_ref, acc_con_ref):
    """One batch tile: accumulate per-sample CE terms into lane-dense scratch."""
    t = pl.program_id(0)
    tn = ypT_ref.shape[1]

    @pl.when(t == 0)
    def _():
        acc_cls_ref[...] = jnp.zeros_like(acc_cls_ref)
        acc_con_ref[...] = jnp.zeros_like(acc_con_ref)

    # Columns (= samples) of this tile; only the final tile can overhang N.
    cols = jax.lax.broadcasted_iota(jnp.int32, (1, tn), 1) + t * tn
    valid = cols < n_total                                         # (1, TN)

    # Labels for this tile.  Resident table is (num_tiles, TN): slice row t.
    if labels_ref.shape[0] > 1:
        labels = labels_ref[pl.ds(t, 1), :]                        # (1, TN) int32
    else:
        labels = labels_ref[...]

    # ---- class loss: lse(yp) - yp[label] per sample (column) ----------------
    yp = ypT_ref[...].astype(jnp.float32)                          # (C_cls, TN)
    m = jnp.max(yp, axis=0, keepdims=True)                         # (1, TN)
    lse = jnp.log(jnp.sum(jnp.exp(yp - m), axis=0, keepdims=True)) + m
    row = jax.lax.broadcasted_iota(jnp.int32, yp.shape, 0)
    picked = jnp.sum(jnp.where(row == labels, yp, 0.0), axis=0, keepdims=True)
    # Mask only the (1, TN) per-sample result; padded-column garbage is
    # column-local and replaced by the select.
    acc_cls_ref[...] += jnp.where(valid, lse - picked, 0.0)

    # ---- concept loss (soft targets): sum(t)*lse(cp) - sum(t*cp) -------------
    cp = cpT_ref[...].astype(jnp.float32)                          # (C_con, TN)
    ct = ctT_ref[...].astype(jnp.float32)                          # (C_con, TN)
    m2 = jnp.max(cp, axis=0, keepdims=True)
    lse2 = jnp.log(jnp.sum(jnp.exp(cp - m2), axis=0, keepdims=True)) + m2
    tsum = jnp.sum(ct, axis=0, keepdims=True)
    tdot = jnp.sum(ct * cp, axis=0, keepdims=True)
    acc_con_ref[...] += jnp.where(valid, tsum * lse2 - tdot, 0.0)

    # Deferred scalar reduction: one cross-lane reduce at the very end only.
    @pl.when(t == pl.num_programs(0) - 1)
    def _():
        class_out_ref[...] = jnp.sum(acc_cls_ref[...], keepdims=True)
        concept_out_ref[...] = jnp.sum(acc_con_ref[...], keepdims=True)


def cbm_loss(concept_preds, concepts_true, y_pred, y_true, *, alpha,
             return_all=False, block_cols=None):
    """Pallas implementation of CBMLoss.forward with reduce_loss=True (mean)."""
    if concept_preds.shape != concepts_true.shape:
        raise ValueError(
            "The concepts labels and concepts logits are expected to be of "
            f"matching shapes\nFound logits: {concept_preds.shape}, "
            f"labels: {concepts_true.shape}")
    # TODO(synk): reduce_loss=False ('none' reduction, per-sample losses) not implemented.

    n, c_cls = y_pred.shape
    _, c_con = concept_preds.shape

    # Lane packing: feature-major / batch-minor so the batch maps onto lanes.
    yp_t = jnp.transpose(y_pred)            # (C_cls, N)
    cp_t = jnp.transpose(concept_preds)     # (C_con, N)
    ct_t = jnp.transpose(concepts_true)     # (C_con, N)

    # ---- batch-tile width (lane dim, multiple of 128 or full extent) --------
    bytes_per_col = (c_cls * y_pred.dtype.itemsize
                     + c_con * (concept_preds.dtype.itemsize
                                + concepts_true.dtype.itemsize)
                     + 2 * 4)                                # f32 accumulators
    vmem_cap = _vmem_capacity_bytes()
    vmem_limit = int(min((vmem_cap * 3) // 4, 96 << 20))     # 48 MiB v7x, 96 MiB v5e/v6e
    stream_budget = max(vmem_limit - (12 << 20), 4 << 20)    # headroom: labels/out/compiler
    tn = max(128, min(32768,
                      _round_down(stream_budget // (2 * bytes_per_col), 128)))
    if block_cols is not None:
        tn = max(128, _round_down(min(block_cols, tn), 128))
    if n <= tn:
        tn = n                                               # single full-extent tile
    num_tiles = -(-n // tn)
    n_padded = num_tiles * tn

    # Labels: (num_tiles, TN) int32 table, resident in VMEM when small.
    labels = jnp.pad(y_true.astype(jnp.int32).reshape(-1), (0, n_padded - n))
    labels = labels.reshape(num_tiles, tn)
    labels_resident = (n_padded * 4) <= (1 << 20)
    if labels_resident:
        label_spec = pl.BlockSpec((num_tiles, tn), lambda t: (0, 0))
    else:
        label_spec = pl.BlockSpec((1, tn), lambda t: (t, 0))

    in_specs = [
        label_spec,
        pl.BlockSpec((c_cls, tn), lambda t: (0, t)),   # y_pred^T
        pl.BlockSpec((c_con, tn), lambda t: (0, t)),   # concept_preds^T
        pl.BlockSpec((c_con, tn), lambda t: (0, t)),   # concepts_true^T
    ]
    out_specs = (
        pl.BlockSpec((1, 1), lambda t: (0, 0)),
        pl.BlockSpec((1, 1), lambda t: (0, 0)),
    )
    out_shape = (
        jax.ShapeDtypeStruct((1, 1), jnp.float32),
        jax.ShapeDtypeStruct((1, 1), jnp.float32),
    )

    bytes_accessed = int(y_pred.size * y_pred.dtype.itemsize
                         + concept_preds.size * concept_preds.dtype.itemsize
                         + concepts_true.size * concepts_true.dtype.itemsize
                         + n_padded * 4 + 8)
    cost = pl.CostEstimate(
        flops=int(8 * n * (c_cls + 2 * c_con)),
        transcendentals=int(n * (c_cls + c_con) + 2 * n),
        bytes_accessed=bytes_accessed)

    class_sum, concept_sum = pl.pallas_call(
        functools.partial(_cbm_kernel, n),
        grid=(num_tiles,),
        in_specs=in_specs,
        out_specs=out_specs,
        out_shape=out_shape,
        scratch_shapes=[pltpu.VMEM((1, tn), jnp.float32),
                        pltpu.VMEM((1, tn), jnp.float32)],
        compiler_params=pltpu.CompilerParams(
            dimension_semantics=("arbitrary",),
            vmem_limit_bytes=vmem_limit),
        cost_estimate=cost,
    )(labels, yp_t, cp_t, ct_t)

    class_loss = class_sum[0, 0] / n
    concept_loss = concept_sum[0, 0] / n
    final_loss = class_loss + alpha * concept_loss
    if return_all:
        return concept_loss, class_loss, final_loss
    return final_loss


if __name__ == "__main__":
    alpha = 0.5

    def reference(cp, ct, yp, yt):
        logp_cls = jax.nn.log_softmax(yp, axis=-1)
        cls = -jnp.mean(jnp.take_along_axis(logp_cls, yt[:, None], axis=1))
        logp_con = jax.nn.log_softmax(cp, axis=-1)
        con = -jnp.mean(jnp.sum(ct * logp_con, axis=-1))
        return con, cls, cls + alpha * con

    # ---- Case 1: tiny batch, single full-extent tile -------------------------
    k1, k2, k3, k4 = jax.random.split(jax.random.PRNGKey(0), 4)
    N, n_classes, n_concepts = 20, 16, 32
    y_pred = jax.random.normal(k1, (N, n_classes), jnp.float32)
    y_true = jax.random.randint(k2, (N,), 0, n_classes, dtype=jnp.int32)
    concept_preds = jax.random.normal(k3, (N, n_concepts), jnp.float32)
    concepts_true = jax.nn.softmax(
        jax.random.normal(k4, (N, n_concepts), jnp.float32), axis=-1)

    ref_con, ref_cls, ref_fin = reference(concept_preds, concepts_true, y_pred, y_true)
    con, cls, fin = cbm_loss(concept_preds, concepts_true, y_pred, y_true,
                             alpha=alpha, return_all=True)
    jax.block_until_ready((con, cls, fin))
    assert np.allclose(np.asarray(cls), np.asarray(ref_cls), atol=1e-5)
    assert np.allclose(np.asarray(con), np.asarray(ref_con), atol=1e-5)
    assert np.allclose(np.asarray(fin), np.asarray(ref_fin), atol=1e-5)

    # ---- Case 2: multi-tile grid with a ragged final tile (mask + accumulate) -
    k5, k6, k7, k8 = jax.random.split(jax.random.PRNGKey(1), 4)
    N2 = 300                                       # 3 tiles of 128, last is ragged
    y_pred2 = jax.random.normal(k5, (N2, n_classes), jnp.float32)
    y_true2 = jax.random.randint(k6, (N2,), 0, n_classes, dtype=jnp.int32)
    concept_preds2 = jax.random.normal(k7, (N2, n_concepts), jnp.float32)
    concepts_true2 = jax.nn.softmax(
        jax.random.normal(k8, (N2, n_concepts), jnp.float32), axis=-1)

    ref_con2, ref_cls2, ref_fin2 = reference(concept_preds2, concepts_true2,
                                             y_pred2, y_true2)
    con2, cls2, fin2 = cbm_loss(concept_preds2, concepts_true2, y_pred2, y_true2,
                                alpha=alpha, return_all=True, block_cols=128)
    jax.block_until_ready((con2, cls2, fin2))
    assert np.allclose(np.asarray(cls2), np.asarray(ref_cls2), atol=1e-5)
    assert np.allclose(np.asarray(con2), np.asarray(ref_con2), atol=1e-5)
    assert np.allclose(np.asarray(fin2), np.asarray(ref_fin2), atol=1e-5)

    fin2_only = cbm_loss(concept_preds2, concepts_true2, y_pred2, y_true2,
                         alpha=alpha, block_cols=128)
    jax.block_until_ready(fin2_only)
    assert np.allclose(np.asarray(fin2_only), np.asarray(ref_fin2), atol=1e-5)

    print("KERNEL_OK")
</pallas_src>

<mosaic_0001>
module attributes {stable_mosaic.version = 11 : i64} {
  func.func @_cbm_kernel(%arg0: i32, %arg1: memref<1x20xi32, #tpu.memory_space<vmem>>, %arg2: memref<16x20xf32, #tpu.memory_space<vmem>>, %arg3: memref<32x20xf32, #tpu.memory_space<vmem>>, %arg4: memref<32x20xf32, #tpu.memory_space<vmem>>, %arg5: memref<1x1xf32, #tpu.memory_space<vmem>>, %arg6: memref<1x1xf32, #tpu.memory_space<vmem>>, %arg7: memref<1x20xf32, #tpu.memory_space<vmem>>, %arg8: memref<1x20xf32, #tpu.memory_space<vmem>>) attributes {dimension_semantics = [#tpu.dimension_semantics<arbitrary>], iteration_bounds = array<i64: 1>, scalar_prefetch = 0 : i64, scratch_operands = 2 : i64, tpu.core_type = #tpu.core_type<tc>, window_params = [{pipeline_mode = #tpu.pipeline_mode<synchronous>, transform_indices = @transform_0, window_bounds = array<i64: 1, 20>}, {transform_indices = @transform_1, window_bounds = array<i64: 16, 20>}, {transform_indices = @transform_2, window_bounds = array<i64: 32, 20>}, {transform_indices = @transform_3, window_bounds = array<i64: 32, 20>}, {pipeline_mode = #tpu.pipeline_mode<synchronous>, transform_indices = @transform_4, window_bounds = array<i64: 1, 1>}, {pipeline_mode = #tpu.pipeline_mode<synchronous>, transform_indices = @transform_5, window_bounds = array<i64: 1, 1>}]} {
    %c0_i32 = arith.constant 0 : i32
    %0 = arith.cmpi eq, %arg0, %c0_i32 : i32
    %1 = arith.extui %0 : i1 to i32
    %c0_i32_0 = arith.constant 0 : i32
    %2 = arith.cmpi ne, %1, %c0_i32_0 : i32
    scf.if %2 {
      %cst_28 = arith.constant 0.000000e+00 : f32
      %59 = vector.broadcast %cst_28 : f32 to vector<1x20xf32>
      %c0_29 = arith.constant 0 : index
      %c0_30 = arith.constant 0 : index
      %60 = vector.load %arg7[%c0_29, %c0_30] : memref<1x20xf32, #tpu.memory_space<vmem>>, vector<1x20xf32>
      tpu.vector_store %arg7[%c0_29, %c0_30], %59 {strides = array<i32>} : memref<1x20xf32, #tpu.memory_space<vmem>>, vector<1x20xf32>,
      %cst_31 = arith.constant 0.000000e+00 : f32
      %61 = vector.broadcast %cst_31 : f32 to vector<1x20xf32>
      %c0_32 = arith.constant 0 : index
      %c0_33 = arith.constant 0 : index
      %62 = vector.load %arg8[%c0_32, %c0_33] : memref<1x20xf32, #tpu.memory_space<vmem>>, vector<1x20xf32>
      tpu.vector_store %arg8[%c0_32, %c0_33], %61 {strides = array<i32>} : memref<1x20xf32, #tpu.memory_space<vmem>>, vector<1x20xf32>,
    } else {
    }
    %3 = tpu.iota {dimensions = array<i32: 1>} : vector<1x20xi32>
    %c20_i32 = arith.constant 20 : i32
    %4 = arith.muli %arg0, %c20_i32 : i32
    %5 = vector.broadcast %4 : i32 to vector<1x20xi32>
    %6 = arith.addi %3, %5 : vector<1x20xi32>
    %c20_i32_1 = arith.constant 20 : i32
    %7 = vector.broadcast %c20_i32_1 : i32 to vector<1x20xi32>
    %8 = arith.cmpi slt, %6, %7 : vector<1x20xi32>
    %c0 = arith.constant 0 : index
    %c0_2 = arith.constant 0 : index
    %9 = vector.load %arg1[%c0, %c0_2] : memref<1x20xi32, #tpu.memory_space<vmem>>, vector<1x20xi32>
    %c0_3 = arith.constant 0 : index
    %c0_4 = arith.constant 0 : index
    %10 = vector.load %arg2[%c0_3, %c0_4] : memref<16x20xf32, #tpu.memory_space<vmem>>, vector<16x20xf32>
    %cst = arith.constant dense<0xFF800000> : vector<20xf32>
    %11 = vector.multi_reduction <maximumf>, %10, %cst [0] : vector<16x20xf32> to vector<20xf32>
    %12 = vector.shape_cast %11 : vector<20xf32> to vector<1x20xf32>
    %13 = vector.broadcast %12 : vector<1x20xf32> to vector<16x20xf32>
    %14 = arith.subf %10, %13 : vector<16x20xf32>
    %15 = math.exp %14 : vector<16x20xf32>
    %cst_5 = arith.constant dense<0.000000e+00> : vector<20xf32>
    %16 = vector.multi_reduction <add>, %15, %cst_5 [0] : vector<16x20xf32> to vector<20xf32>
    %17 = vector.shape_cast %16 : vector<20xf32> to vector<1x20xf32>
    %18 = math.log %17 : vector<1x20xf32>
    %19 = arith.addf %18, %12 : vector<1x20xf32>
    %20 = tpu.iota {dimensions = array<i32: 0>} : vector<16x20xi32>
    %21 = vector.broadcast %9 : vector<1x20xi32> to vector<16x20xi32>
    %22 = arith.cmpi eq, %20, %21 : vector<16x20xi32>
    %cst_6 = arith.constant 0.000000e+00 : f32
    %23 = vector.broadcast %cst_6 : f32 to vector<16x20xf32>
    %24 = arith.select %22, %10, %23 : vector<16x20xi1>, vector<16x20xf32>
    %cst_7 = arith.constant dense<0.000000e+00> : vector<20xf32>
    %25 = vector.multi_reduction <add>, %24, %cst_7 [0] : vector<16x20xf32> to vector<20xf32>
    %26 = vector.shape_cast %25 : vector<20xf32> to vector<1x20xf32>
    %c0_8 = arith.constant 0 : index
    %c0_9 = arith.constant 0 : index
    %27 = vector.load %arg7[%c0_8, %c0_9] : memref<1x20xf32, #tpu.memory_space<vmem>>, vector<1x20xf32>
    %28 = arith.subf %19, %26 : vector<1x20xf32>
    %cst_10 = arith.constant 0.000000e+00 : f32
    %29 = vector.broadcast %cst_10 : f32 to vector<1x20xf32>
    %30 = arith.select %8, %28, %29 : vector<1x20xi1>, vector<1x20xf32>
    %31 = arith.addf %27, %30 : vector<1x20xf32>
    %c0_11 = arith.constant 0 : index
    %c0_12 = arith.constant 0 : index
    %32 = vector.load %arg7[%c0_11, %c0_12] : memref<1x20xf32, #tpu.memory_space<vmem>>, vector<1x20xf32>
    tpu.vector_store %arg7[%c0_11, %c0_12], %31 {strides = array<i32>} : memref<1x20xf32, #tpu.memory_space<vmem>>, vector<1x20xf32>,
    %c0_13 = arith.constant 0 : index
    %c0_14 = arith.constant 0 : index
    %33 = vector.load %arg3[%c0_13, %c0_14] : memref<32x20xf32, #tpu.memory_space<vmem>>, vector<32x20xf32>
    %c0_15 = arith.constant 0 : index
    %c0_16 = arith.constant 0 : index
    %34 = vector.load %arg4[%c0_15, %c0_16] : memref<32x20xf32, #tpu.memory_space<vmem>>, vector<32x20xf32>
    %cst_17 = arith.constant dense<0xFF800000> : vector<20xf32>
    %35 = vector.multi_reduction <maximumf>, %33, %cst_17 [0] : vector<32x20xf32> to vector<20xf32>
    %36 = vector.shape_cast %35 : vector<20xf32> to vector<1x20xf32>
    %37 = vector.broadcast %36 : vector<1x20xf32> to vector<32x20xf32>
    %38 = arith.subf %33, %37 : vector<32x20xf32>
    %39 = math.exp %38 : vector<32x20xf32>
    %cst_18 = arith.constant dense<0.000000e+00> : vector<20xf32>
    %40 = vector.multi_reduction <add>, %39, %cst_18 [0] : vector<32x20xf32> to vector<20xf32>
    %41 = vector.shape_cast %40 : vector<20xf32> to vector<1x20xf32>
    %42 = math.log %41 : vector<1x20xf32>
    %43 = arith.addf %42, %36 : vector<1x20xf32>
    %cst_19 = arith.constant dense<0.000000e+00> : vector<20xf32>
    %44 = vector.multi_reduction <add>, %34, %cst_19 [0] : vector<32x20xf32> to vector<20xf32>
    %45 = vector.shape_cast %44 : vector<20xf32> to vector<1x20xf32>
    %46 = arith.mulf %34, %33 : vector<32x20xf32>
    %cst_20 = arith.constant dense<0.000000e+00> : vector<20xf32>
    %47 = vector.multi_reduction <add>, %46, %cst_20 [0] : vector<32x20xf32> to vector<20xf32>
    %48 = vector.shape_cast %47 : vector<20xf32> to vector<1x20xf32>
    %c0_21 = arith.constant 0 : index
    %c0_22 = arith.constant 0 : index
    %49 = vector.load %arg8[%c0_21, %c0_22] : memref<1x20xf32, #tpu.memory_space<vmem>>, vector<1x20xf32>
    %50 = arith.mulf %45, %43 : vector<1x20xf32>
    %51 = arith.subf %50, %48 : vector<1x20xf32>
    %cst_23 = arith.constant 0.000000e+00 : f32
    %52 = vector.broadcast %cst_23 : f32 to vector<1x20xf32>
    %53 = arith.select %8, %51, %52 : vector<1x20xi1>, vector<1x20xf32>
    %54 = arith.addf %49, %53 : vector<1x20xf32>
    %c0_24 = arith.constant 0 : index
    %c0_25 = arith.constant 0 : index
    %55 = vector.load %arg8[%c0_24, %c0_25] : memref<1x20xf32, #tpu.memory_space<vmem>>, vector<1x20xf32>
    tpu.vector_store %arg8[%c0_24, %c0_25], %54 {strides = array<i32>} : memref<1x20xf32, #tpu.memory_space<vmem>>, vector<1x20xf32>,
    %c0_i32_26 = arith.constant 0 : i32
    %56 = arith.cmpi eq, %arg0, %c0_i32_26 : i32
    %57 = arith.extui %56 : i1 to i32
    %c0_i32_27 = arith.constant 0 : i32
    %58 = arith.cmpi ne, %57, %c0_i32_27 : i32
    scf.if %58 {
      %c0_28 = arith.constant 0 : index
      %c0_29 = arith.constant 0 : index
      %59 = vector.load %arg7[%c0_28, %c0_29] : memref<1x20xf32, #tpu.memory_space<vmem>>, vector<1x20xf32>
      %60 = vector.shape_cast %59 : vector<1x20xf32> to vector<1x1x20xf32>
      %cst_30 = arith.constant dense<0.000000e+00> : vector<1xf32>
      %61 = vector.multi_reduction <add>, %60, %cst_30 [1, 2] : vector<1x1x20xf32> to vector<1xf32>
      %62 = vector.shape_cast %61 : vector<1xf32> to vector<1x1x1xf32>
      %63 = vector.extract %62[0, 0, 0] : f32 from vector<1x1x1xf32>
      %64 = vector.broadcast %63 : f32 to vector<1x1xf32>
      %c0_31 = arith.constant 0 : index
      %c0_32 = arith.constant 0 : index
      %65 = vector.load %arg5[%c0_31, %c0_32] : memref<1x1xf32, #tpu.memory_space<vmem>>, vector<1x1xf32>
      tpu.vector_store %arg5[%c0_31, %c0_32], %64 {strides = array<i32>} : memref<1x1xf32, #tpu.memory_space<vmem>>, vector<1x1xf32>,
      %c0_33 = arith.constant 0 : index
      %c0_34 = arith.constant 0 : index
      %66 = vector.load %arg8[%c0_33, %c0_34] : memref<1x20xf32, #tpu.memory_space<vmem>>, vector<1x20xf32>
      %67 = vector.shape_cast %66 : vector<1x20xf32> to vector<1x1x20xf32>
      %cst_35 = arith.constant dense<0.000000e+00> : vector<1xf32>
      %68 = vector.multi_reduction <add>, %67, %cst_35 [1, 2] : vector<1x1x20xf32> to vector<1xf32>
      %69 = vector.shape_cast %68 : vector<1xf32> to vector<1x1x1xf32>
      %70 = vector.extract %69[0, 0, 0] : f32 from vector<1x1x1xf32>
      %71 = vector.broadcast %70 : f32 to vector<1x1xf32>
      %c0_36 = arith.constant 0 : index
      %c0_37 = arith.constant 0 : index
      %72 = vector.load %arg6[%c0_36, %c0_37] : memref<1x1xf32, #tpu.memory_space<vmem>>, vector<1x1xf32>
      tpu.vector_store %arg6[%c0_36, %c0_37], %71 {strides = array<i32>} : memref<1x1xf32, #tpu.memory_space<vmem>>, vector<1x1xf32>,
    } else {
    }
    return
  }
  func.func @transform_0(%arg0: i32) -> (i32, i32) {
    %c0_i32 = arith.constant 0 : i32
    %c0_i32_0 = arith.constant 0 : i32
    %c0_i32_1 = arith.constant 0 : i32
    return %c0_i32, %c0_i32_0 : i32, i32
  }
  func.func @transform_1(%arg0: i32) -> (i32, i32) {
    %c0_i32 = arith.constant 0 : i32
    %c0_i32_0 = arith.constant 0 : i32
    return %c0_i32, %arg0 : i32, i32
  }
  func.func @transform_2(%arg0: i32) -> (i32, i32) {
    %c0_i32 = arith.constant 0 : i32
    %c0_i32_0 = arith.constant 0 : i32
    return %c0_i32, %arg0 : i32, i32
  }
  func.func @transform_3(%arg0: i32) -> (i32, i32) {
    %c0_i32 = arith.constant 0 : i32
    %c0_i32_0 = arith.constant 0 : i32
    return %c0_i32, %arg0 : i32, i32
  }
  func.func @transform_4(%arg0: i32) -> (i32, i32) {
    %c0_i32 = arith.constant 0 : i32
    %c0_i32_0 = arith.constant 0 : i32
    %c0_i32_1 = arith.constant 0 : i32
    return %c0_i32, %c0_i32_0 : i32, i32
  }
  func.func @transform_5(%arg0: i32) -> (i32, i32) {
    %c0_i32 = arith.constant 0 : i32
    %c0_i32_0 = arith.constant 0 : i32
    %c0_i32_1 = arith.constant 0 : i32
    return %c0_i32, %c0_i32_0 : i32, i32
  }
}

</mosaic_0001>

<llo_original>
// kernel: tpu_custom_call.1
$region0: #{tpu_custom_call.1}
  #allocation0 [shape = 'u32[]', space=smem, size = 0x4, offset = 0x4, fixed_abs, tag = 'smem constant byte address 0x4 - core index']
  #allocation1 [shape = 'u32[144,128]{1,0:T(1,128)}', space=vmem, size = 0x12000, scoped, tag = 'internal scratch']
  #allocation2 [shape = 'f32[1,20]{1,0:T(1,128)}', space=vmem, size = 0x200, scoped, tag = 'scratch operand']
  #allocation3 [shape = 'f32[1,20]{1,0:T(1,128)}', space=vmem, size = 0x200, scoped, tag = 'scratch operand']
  %s0 = inlined_call_operand.vmem [shape: s32[1,20], index: 0, kind: input, shape index: {}]
  %s1 = inlined_call_operand.vmem [shape: f32[16,20], index: 1, kind: input, shape index: {}]
  %s2 = inlined_call_operand.vmem [shape: f32[32,20], index: 2, kind: input, shape index: {}]
  %s3 = inlined_call_operand.vmem [shape: f32[32,20], index: 3, kind: input, shape index: {}]
  %s4 = inlined_call_operand.hbm [shape: f32[1,1], index: 4, kind: output, shape index: {0}]
  %s5 = inlined_call_operand.hbm [shape: f32[1,1], index: 5, kind: output, shape index: {1}]
  %6 = xla_tuple %s4, %s5
  %s7 = sld [smem:[#allocation0]]
  $region42: #{tpu_custom_call.1} parent=0
    _
  %s9 = ssub.s32 1, %s7
  %s10 = scalar_select 0, %s9, %s7
  $region1: #{tpu_custom_call.1} parent=0
    #allocation4 [shape = 'u8[512]{0}', space=vmem, size = 0x400, scoped, tag = 'output window, operand 0, single buffered']
    #allocation5 [shape = 's32[1]{0}', space=sflag, size = 0x4, scoped, tag = 'scoped memory for tpu_custom_call.1']
    #allocation6 [shape = 'u8[512]{0}', space=vmem, size = 0x400, scoped, tag = 'output window, operand 1, single buffered']
    #allocation7 [shape = 's32[1]{0}', space=sflag, size = 0x4, scoped, tag = 'scoped memory for tpu_custom_call.1']
    %11 = vsyncpa [#allocation5], 0
    %12 = vsyncpa [#allocation7], 0
    // Predicated region
    $region2: #{tpu_custom_call.1} parent=1 // pred_check
      _
    $region3: #{tpu_custom_call.1} parent=1 // pred_check_branch
      %14 = sbr.rel (0) target = $region5
    $region4: #{tpu_custom_call.1} parent=1 // pred_region
      _
    $region5: #{tpu_custom_call.1} parent=1 // pred_fallthru
      _
    // Predicated region
    $region6: #{tpu_custom_call.1} parent=1 // pred_check
      _
    $region7: #{tpu_custom_call.1} parent=1 // pred_check_branch
      %16 = sbr.rel (0) target = $region9
    $region8: #{tpu_custom_call.1} parent=1 // pred_region
      _
    $region9: #{tpu_custom_call.1} parent=1 // pred_fallthru
      _
    // Predicated region
    $region10: #{tpu_custom_call.1} parent=1 // pred_check
      _
    $region11: #{tpu_custom_call.1} parent=1 // pred_check_branch
      %18 = sbr.rel (0) target = $region13
    $region12: #{tpu_custom_call.1} parent=1 // pred_region
      _
    $region13: #{tpu_custom_call.1} parent=1 // pred_fallthru
      _
    // Predicated region
    $region14: #{tpu_custom_call.1} parent=1 // pred_check
      _
    $region15: #{tpu_custom_call.1} parent=1 // pred_check_branch
      %20 = sbr.rel (0) target = $region17
    $region16: #{tpu_custom_call.1} parent=1 // pred_region
      _
    $region17: #{tpu_custom_call.1} parent=1 // pred_fallthru
      _
    %p21 = scmp.eq.s32.totalorder 0, 0
    // Predicated region
    $region18: #{tpu_custom_call.1} parent=1 // pred_check
      %p22 = pneg %p21
    $region19: #{tpu_custom_call.1} parent=1 // pred_check_branch
      %24 = sbr.rel (%p22) target = $region21
    $region20: #{tpu_custom_call.1} parent=1 // pred_region
      %vm25 = vcmask 155648
      %26 = vst.msk [vmem:[#allocation2] sm:$0x1] %vm25, 0.0
      %27 = vst.msk [vmem:[#allocation3] sm:$0x1] %vm25, 0.0
    $region21: #{tpu_custom_call.1} parent=1 // pred_fallthru
      _
    %v28 = vlaneseq
    %v29 = vand.u32 %v28, 127
    %s30 = smul.u32 0, 20
    %v31 = vstv %s30
    %v32 = vadd.s32 %v29, %v31
    %vm33 = vcmp.lt.s32.totalorder %v32, 20
    %v34 = vld [vmem:[%s0] sm:$0x1]
    %v35 = vld [vmem:[%s1] sm:$0xff]
    %v36 = vld [vmem:[%s1 + $0x8] sm:$0xff]
    %vm37 = vcmask 162816
    %v38 = vsel %vm37, %v35, -inf
    %v39 = vsel %vm37, %v36, -inf
    %v40 = vmax.f32 %v38, %v39
    %v41 = vrot.slane %v40, 4
    %v42 = vmax.f32 %v40, %v41
    %v43 = vrot.slane %v42, 2
    %v44 = vmax.f32 %v42, %v43
    %v45 = vrot.slane %v44, 1
    %v46 = vmax.f32 %v44, %v45
    %v47 = vsub.f32 %v35, %v46
    %v48 = vsub.f32 %v36, %v46
    %v49 = vmul.f32 %v47, 1.442695
    %v50 = vpow.pop %v49
    %v51 = vmul.f32 %v48, 1.442695
    %v52 = vpow.pop %v51
    %v53 = vsel %vm37, %v50, 0.0
    %v54 = vsel %vm37, %v52, 0.0
    %v55 = vadd.f32 %v53, %v54
    %v56 = vrot.slane %v55, 4
    %v57 = vadd.f32 %v55, %v56
    %v58 = vrot.slane %v57, 2
    %v59 = vadd.f32 %v57, %v58
    %v60 = vrot.slane %v59, 1
    %v61 = vadd.f32 %v59, %v60
    %v62 = vlog2.pop %v61
    %v63 = vmul.f32 %v62, 0.6931472
    %v64 = vadd.f32 %v63, %v46
    %v65 = vlaneseq
    %v66 = vshrl.u32 %v65, 7
    %v67 = vadd.s32 %v66, 8
    %v68 = vlaneseq
    %v69 = vshrl.u32 %v68, 7
    %v70 = vsub.s32 0, %v69
    %v71 = vrot.slane %v34, %v70
    %vm72 = vcmp.eq.s32.totalorder %v66, %v71
    %vm73 = vcmp.eq.s32.totalorder %v67, %v71
    %v74 = vsel %vm72, %v35, 0.0
    %v75 = vsel %vm73, %v36, 0.0
    %v76 = vsel %vm37, %v74, 0.0
    %v77 = vsel %vm37, %v75, 0.0
    %v78 = vadd.f32 %v76, %v77
    %v79 = vrot.slane %v78, 4
    %v80 = vadd.f32 %v78, %v79
    %v81 = vrot.slane %v80, 2
    %v82 = vadd.f32 %v80, %v81
    %v83 = vrot.slane %v82, 1
    %v84 = vadd.f32 %v82, %v83
    %v85 = vld [vmem:[#allocation2] sm:$0x1]
    %v86 = vsub.f32 %v64, %v84
    %v87 = vsel %vm33, %v86, 0.0
    %v88 = vadd.f32 %v85, %v87
    %vm89 = vcmask 155648
    %90 = vst.msk [vmem:[#allocation2] sm:$0x1] %vm89, %v88
    %v91 = vld [vmem:[%s2] sm:$0xff]
    %v92 = vld [vmem:[%s2 + $0x8] sm:$0xff]
    %v93 = vld [vmem:[%s2 + $0x10] sm:$0xff]
    %v94 = vld [vmem:[%s2 + $0x18] sm:$0xff]
    %v95 = vld [vmem:[%s3] sm:$0xff]
    %v96 = vld [vmem:[%s3 + $0x8] sm:$0xff]
    %v97 = vld [vmem:[%s3 + $0x10] sm:$0xff]
    %v98 = vld [vmem:[%s3 + $0x18] sm:$0xff]
    %v99 = vsel %vm37, %v91, -inf
    %v100 = vsel %vm37, %v92, -inf
    %v101 = vsel %vm37, %v93, -inf
    %v102 = vsel %vm37, %v94, -inf
    %v103 = vmax.f32 %v99, %v100
    %v104 = vmax.f32 %v101, %v102
    %v105 = vmax.f32 %v103, %v104
    %v106 = vrot.slane %v105, 4
    %v107 = vmax.f32 %v105, %v106
    %v108 = vrot.slane %v107, 2
    %v109 = vmax.f32 %v107, %v108
    %v110 = vrot.slane %v109, 1
    %v111 = vmax.f32 %v109, %v110
    %v112 = vsub.f32 %v91, %v111
    %v113 = vsub.f32 %v92, %v111
    %v114 = vsub.f32 %v93, %v111
    %v115 = vsub.f32 %v94, %v111
    %v116 = vmul.f32 %v112, 1.442695
    %v117 = vpow.pop %v116
    %v118 = vmul.f32 %v113, 1.442695
    %v119 = vpow.pop %v118
    %v120 = vmul.f32 %v114, 1.442695
    %v121 = vpow.pop %v120
    %v122 = vmul.f32 %v115, 1.442695
    %v123 = vpow.pop %v122
    %v124 = vsel %vm37, %v117, 0.0
    %v125 = vsel %vm37, %v119, 0.0
    %v126 = vadd.f32 %v124, %v125
    %v127 = vsel %vm37, %v121, 0.0
    %v128 = vadd.f32 %v126, %v127
    %v129 = vsel %vm37, %v123, 0.0
    %v130 = vadd.f32 %v128, %v129
    %v131 = vrot.slane %v130, 4
    %v132 = vadd.f32 %v130, %v131
    %v133 = vrot.slane %v132, 2
    %v134 = vadd.f32 %v132, %v133
    %v135 = vrot.slane %v134, 1
    %v136 = vadd.f32 %v134, %v135
    %v137 = vlog2.pop %v136
    %v138 = vmul.f32 %v137, 0.6931472
    %v139 = vadd.f32 %v138, %v111
    %v140 = vsel %vm37, %v95, 0.0
    %v141 = vsel %vm37, %v96, 0.0
    %v142 = vadd.f32 %v140, %v141
    %v143 = vsel %vm37, %v97, 0.0
    %v144 = vadd.f32 %v142, %v143
    %v145 = vsel %vm37, %v98, 0.0
    %v146 = vadd.f32 %v144, %v145
    %v147 = vrot.slane %v146, 4
    %v148 = vadd.f32 %v146, %v147
    %v149 = vrot.slane %v148, 2
    %v150 = vadd.f32 %v148, %v149
    %v151 = vrot.slane %v150, 1
    %v152 = vadd.f32 %v150, %v151
    %v153 = vmul.f32 %v95, %v91
    %v154 = vmul.f32 %v96, %v92
    %v155 = vmul.f32 %v97, %v93
    %v156 = vmul.f32 %v98, %v94
    %v157 = vsel %vm37, %v153, 0.0
    %v158 = vsel %vm37, %v154, 0.0
    %v159 = vadd.f32 %v157, %v158
    %v160 = vsel %vm37, %v155, 0.0
    %v161 = vadd.f32 %v159, %v160
    %v162 = vsel %vm37, %v156, 0.0
    %v163 = vadd.f32 %v161, %v162
    %v164 = vrot.slane %v163, 4
    %v165 = vadd.f32 %v163, %v164
    %v166 = vrot.slane %v165, 2
    %v167 = vadd.f32 %v165, %v166
    %v168 = vrot.slane %v167, 1
    %v169 = vadd.f32 %v167, %v168
    %v170 = vld [vmem:[#allocation3] sm:$0x1]
    %v171 = vmul.f32 %v152, %v139
    %v172 = vsub.f32 %v171, %v169
    %v173 = vsel %vm33, %v172, 0.0
    %v174 = vadd.f32 %v170, %v173
    %175 = vst.msk [vmem:[#allocation3] sm:$0x1] %vm89, %v174
    // Predicated region
    $region22: #{tpu_custom_call.1} parent=1 // pred_check
      %p176 = pneg %p21
    $region23: #{tpu_custom_call.1} parent=1 // pred_check_branch
      %178 = sbr.rel (%p176) target = $region25
    $region24: #{tpu_custom_call.1} parent=1 // pred_region
      %v179 = vld [vmem:[#allocation2] sm:$0x1]
      %v180 = vsel %vm89, %v179, 0.0
      %181 = vadd.xlane.f32.xlu0 %v180
      %v182 = vpop.xlane.xlu0 %181
      %v183 = vrot.slane %v182, 4
      %v184 = vadd.f32 %v182, %v183
      %v185 = vrot.slane %v184, 2
      %v186 = vadd.f32 %v184, %v185
      %v187 = vrot.slane %v186, 1
      %v188 = vadd.f32 %v186, %v187
      %s189 = vtos %v188
      %v190 = vstv %s189
      %vm191 = vcmask 0
      %192 = vst.msk [vmem:[#allocation4] sm:$0x1] %vm191, %v190
      %v193 = vld [vmem:[#allocation3] sm:$0x1]
      %v194 = vsel %vm89, %v193, 0.0
      %195 = vadd.xlane.f32.xlu0 %v194
      %v196 = vpop.xlane.xlu0 %195
      %v197 = vrot.slane %v196, 4
      %v198 = vadd.f32 %v196, %v197
      %v199 = vrot.slane %v198, 2
      %v200 = vadd.f32 %v198, %v199
      %v201 = vrot.slane %v200, 1
      %v202 = vadd.f32 %v200, %v201
      %s203 = vtos %v202
      %v204 = vstv %s203
      %205 = vst.msk [vmem:[#allocation6] sm:$0x1] %vm191, %v204
    $region25: #{tpu_custom_call.1} parent=1 // pred_fallthru
      _
    // Predicated region
    $region26: #{tpu_custom_call.1} parent=1 // pred_check
      _
    $region27: #{tpu_custom_call.1} parent=1 // pred_check_branch
      %207 = sbr.rel (0) target = $region29
    $region28: #{tpu_custom_call.1} parent=1 // pred_region
      %s209 = ssub.s32 16, 16
      %210 = vsyncadd [#allocation5], %s209
      %s212 = sshll.u32 [#allocation4], 4
      %s213 = int_to_ptr.vmem [resolvable:$true] %s212
      %215 = dma.vmem_to_hbm [thread:$0]  %s213, 16, %s4, [#allocation5]
    $region29: #{tpu_custom_call.1} parent=1 // pred_fallthru
      _
    // Predicated region
    $region30: #{tpu_custom_call.1} parent=1 // pred_check
      _
    $region31: #{tpu_custom_call.1} parent=1 // pred_check_branch
      %217 = sbr.rel (0) target = $region33
    $region32: #{tpu_custom_call.1} parent=1 // pred_region
      %s219 = ssub.s32 16, 16
      %220 = vsyncadd [#allocation7], %s219
      %s222 = sshll.u32 [#allocation6], 4
      %s223 = int_to_ptr.vmem [resolvable:$true] %s222
      %225 = dma.vmem_to_hbm [thread:$0]  %s223, 16, %s5, [#allocation7]
    $region33: #{tpu_custom_call.1} parent=1 // pred_fallthru
      _
    // Predicated region
    $region34: #{tpu_custom_call.1} parent=1 // pred_check
      _
    $region35: #{tpu_custom_call.1} parent=1 // pred_check_branch
      %227 = sbr.rel (0) target = $region37
    $region36: #{tpu_custom_call.1} parent=1 // pred_region
      %228 = dma.done [#allocation5], 16
    $region37: #{tpu_custom_call.1} parent=1 // pred_fallthru
      _
    // Predicated region
    $region38: #{tpu_custom_call.1} parent=1 // pred_check
      _
    $region39: #{tpu_custom_call.1} parent=1 // pred_check_branch
      %230 = sbr.rel (0) target = $region41
    $region40: #{tpu_custom_call.1} parent=1 // pred_region
      %231 = dma.done [#allocation7], 16
    $region41: #{tpu_custom_call.1} parent=1 // pred_fallthru
      _
    %232 = vsyncpa [#allocation5], 1
    %233 = vsyncpa [#allocation7], 1

</llo_original>
